<compile_context>
chip_gen: v5e
topology: v5e:2x2
jax: 0.10.0
libtpu: 0.0.40
codegen_flags: <defaults>
</compile_context>

<pallas_src>
import functools

import jax
import jax.numpy as jnp
from jax.experimental import pallas as pl
from jax.experimental.pallas import tpu as pltpu

_LN_EPS = 1e-5
_INV_SQRT2 = 0.7071067811865476
_SQRT_2_OVER_PI = 0.7978845608028654
_GELU_C = 0.044715


# --------------------------------------------------------------------------
# Kernel
# --------------------------------------------------------------------------
def ffn_kernel(x_ref, w1_ref, b1_ref, g_ref, beta_ref, w2_ref, b2_ref, o_ref,
               h_ref, sum_ref, sumsq_ref, acc_ref,
               *, n_dff, inv_dff, eps, elem_dtype, approx_gelu):
    """Grid = (row tiles, 2 * n_dff).

    j <  n_dff : phase 1 — linear1 tile + LayerNorm statistics.
    j >= n_dff : phase 2 — normalize + GELU + linear2 accumulation.
    """
    j = pl.program_id(1)

    @pl.when(j == 0)
    def _init():
        sum_ref[...] = jnp.zeros_like(sum_ref)
        sumsq_ref[...] = jnp.zeros_like(sumsq_ref)
        acc_ref[...] = jnp.zeros_like(acc_ref)

    @pl.when(j < n_dff)
    def _phase1():
        x = x_ref[...].astype(jnp.bfloat16)          # in-kernel downcast
        h = jnp.dot(x, w1_ref[...], preferred_element_type=jnp.float32)
        h = h + b1_ref[...]
        sum_ref[...] += jnp.sum(h, axis=-1, keepdims=True)
        sumsq_ref[...] += jnp.sum(h * h, axis=-1, keepdims=True)
        h_ref[j] = h.astype(h_ref.dtype)             # stash bf16 hidden tile

    @pl.when(j >= n_dff)
    def _phase2():
        k = j - n_dff

        @pl.when(j == n_dff)
        def _finalize_stats():
            mu = sum_ref[...] * inv_dff
            var = sumsq_ref[...] * inv_dff - mu * mu
            rstd = jax.lax.rsqrt(var + eps)
            sum_ref[...] = mu * rstd                 # reuse: shift = mu * rstd
            sumsq_ref[...] = rstd                    # reuse: scale = rstd

        shift = sum_ref[...].astype(elem_dtype)      # (tm, 1)
        scale = sumsq_ref[...].astype(elem_dtype)    # (tm, 1)
        h = h_ref[k].astype(elem_dtype)
        hn = (h * scale - shift) * g_ref[...].astype(elem_dtype) \
             + beta_ref[...].astype(elem_dtype)

        if approx_gelu:
            inner = _SQRT_2_OVER_PI * (hn + _GELU_C * hn * hn * hn)
            a = 0.5 * hn * (1.0 + jnp.tanh(inner))   # tanh -> EUP slot
        else:
            a = 0.5 * hn * (1.0 + jax.lax.erf(hn * _INV_SQRT2))

        acc_ref[...] += jnp.dot(a.astype(w2_ref.dtype), w2_ref[...],
                                preferred_element_type=jnp.float32)

        # TODO(synk): dropout is eval-mode identity; training-mode dropout
        # would use pltpu.prng_seed / pltpu.prng_random_bits + a keep-mask.
        @pl.when(j == 2 * n_dff - 1)
        def _store():
            o_ref[...] = (acc_ref[...] + b2_ref[...]).astype(o_ref.dtype)


# --------------------------------------------------------------------------
# Host-side helpers
# --------------------------------------------------------------------------
def _round_up(a, b):
    return (a + b - 1) // b * b


def _pad2d(a, rows, cols):
    pr, pc = rows - a.shape[0], cols - a.shape[1]
    if pr or pc:
        a = jnp.pad(a, ((0, pr), (0, pc)))
    return a


@functools.lru_cache(maxsize=1)
def _device_kind():
    try:
        return jax.devices()[0].device_kind.lower()
    except Exception:
        return ""


@functools.lru_cache(maxsize=1)
def _tpu_vmem_capacity_bytes():
    try:
        info = pltpu.get_tpu_info()
        v = getattr(info, "vmem_capacity_bytes", None)
        if v:
            return int(v)
    except Exception:
        pass
    if "v7" in _device_kind():
        return 64 * 1024 * 1024
    return 128 * 1024 * 1024


@functools.lru_cache(maxsize=1)
def _bf16_elementwise_ok():
    # v6e/v7x VPU/EUP are bf16-capable; v5e (and older) would emulate bf16.
    kind = _device_kind()
    return any(t in kind for t in ("v6", "v7"))


def _pick_tk(dff):
    """Largest tk in {512,256,128} that minimizes dff padding."""
    best = None
    for cand in (512, 256, 128):
        pad = _round_up(max(dff, 1), cand)
        if best is None or pad < best[1]:
            best = (cand, pad)
    return best


def _vmem_need_bytes(tm, tk, dm_pad, dff_pad, x_itemsize, out_itemsize):
    n_dff = dff_pad // tk
    need = 0
    need += 2 * tm * dm_pad * x_itemsize          # x tile, double buffered
    need += 2 * tm * dm_pad * out_itemsize        # out tile, double buffered
    need += 2 * dm_pad * tk * 2                   # w1 tile (bf16)
    need += 2 * tk * dm_pad * 2                   # w2 tile (bf16)
    need += 2 * (3 * tk + dm_pad) * 4             # b1 / gamma / beta / b2
    need += n_dff * tm * tk * 2                   # stashed h (bf16)
    need += tm * dm_pad * 4                       # f32 linear2 accumulator
    need += 3 * tm * tk * 4                       # in-flight f32 intermediates
    return need


# --------------------------------------------------------------------------
# Wrapper
# --------------------------------------------------------------------------
@functools.partial(jax.jit,
                   static_argnames=("tm", "tk", "out_dtype", "approx_gelu"))
def _feed_forward_impl(x, w1, b1, gamma, beta, w2, b2, *, tm, tk, out_dtype,
                       approx_gelu):
    B, S, d_model = x.shape
    dff = w1.shape[1]
    M = B * S
    out_dtype = x.dtype if out_dtype is None else jnp.dtype(out_dtype)

    cap = _tpu_vmem_capacity_bytes()
    elem_dtype = jnp.bfloat16 if _bf16_elementwise_ok() else jnp.float32

    # ---- tile selection (generation aware) ----
    if tk is None:
        tk, dff_pad = _pick_tk(dff)
    else:
        dff_pad = _round_up(dff, tk)
    if tm is None:
        tm = 128 if cap <= 80 * 1024 * 1024 else 256   # v7x: 64 MiB / TC
    dm_pad = max(128, _round_up(d_model, 128))          # lane-dense output
    tm_eff = max(16, min(tm, _round_up(M, 16)))

    budget = int(0.70 * cap)
    while _vmem_need_bytes(tm_eff, tk, dm_pad, dff_pad,
                           x.dtype.itemsize, out_dtype.itemsize) > budget:
        if tk > 128:
            tk //= 2
            dff_pad = _round_up(dff, tk)
        elif tm_eff > 64:
            tm_eff //= 2
        else:
            break

    n_dff = dff_pad // tk
    M_pad = _round_up(M, tm_eff)
    n_rows = M_pad // tm_eff

    # ---- operands (pad only when needed; cast x in-kernel otherwise) ----
    x2d = x.reshape(M, d_model)
    if (M_pad != M) or (dm_pad != d_model):
        # pad fused with the bf16 downcast so the kernel reads half the bytes
        x2d = jnp.pad(x2d.astype(jnp.bfloat16),
                      ((0, M_pad - M), (0, dm_pad - d_model)))

    w1_p = _pad2d(w1.astype(jnp.bfloat16), dm_pad, dff_pad)
    w2_p = _pad2d(w2.astype(jnp.bfloat16), dff_pad, dm_pad)
    b1_p = _pad2d(b1.reshape(1, dff).astype(jnp.float32), 1, dff_pad)
    g_p = _pad2d(gamma.reshape(1, dff).astype(jnp.float32), 1, dff_pad)
    be_p = _pad2d(beta.reshape(1, dff).astype(jnp.float32), 1, dff_pad)
    b2_p = _pad2d(b2.reshape(1, d_model).astype(jnp.float32), 1, dm_pad)

    # ---- BlockSpecs (clamped index maps => each weight tile DMA'd once) ----
    last1 = n_dff - 1
    x_spec = pl.BlockSpec((tm_eff, dm_pad), lambda i, j: (i, 0))
    w1_spec = pl.BlockSpec((dm_pad, tk), lambda i, j: (0, jnp.minimum(j, last1)))
    b1_spec = pl.BlockSpec((1, tk), lambda i, j: (0, jnp.minimum(j, last1)))
    g_spec = pl.BlockSpec((1, tk), lambda i, j: (0, jnp.maximum(j - n_dff, 0)))
    be_spec = pl.BlockSpec((1, tk), lambda i, j: (0, jnp.maximum(j - n_dff, 0)))
    w2_spec = pl.BlockSpec((tk, dm_pad), lambda i, j: (jnp.maximum(j - n_dff, 0), 0))
    b2_spec = pl.BlockSpec((1, dm_pad), lambda i, j: (0, 0))
    out_spec = pl.BlockSpec((tm_eff, dm_pad), lambda i, j: (i, 0))

    scratch = [
        pltpu.VMEM((n_dff, tm_eff, tk), jnp.bfloat16),   # stashed h tiles
        pltpu.VMEM((tm_eff, 1), jnp.float32),            # row sum -> mu*rstd
        pltpu.VMEM((tm_eff, 1), jnp.float32),            # row sumsq -> rstd
        pltpu.VMEM((tm_eff, dm_pad), jnp.float32),       # linear2 accumulator
    ]

    vmem_need = _vmem_need_bytes(tm_eff, tk, dm_pad, dff_pad,
                                 x2d.dtype.itemsize, out_dtype.itemsize)
    vmem_limit = int(min(int(0.92 * cap),
                         max(2 * vmem_need, 32 * 1024 * 1024)))

    weight_sweep_bytes = 2 * dm_pad * dff_pad * 2 + (3 * dff_pad + dm_pad) * 4
    cost = pl.CostEstimate(
        flops=4 * M_pad * dm_pad * dff_pad,               # two matmuls
        transcendentals=M_pad * dff_pad,                  # tanh (GELU)
        bytes_accessed=(x2d.size * x2d.dtype.itemsize
                        + M_pad * dm_pad * out_dtype.itemsize
                        + n_rows * weight_sweep_bytes),
    )

    kernel = functools.partial(
        ffn_kernel, n_dff=n_dff, inv_dff=1.0 / dff, eps=_LN_EPS,
        elem_dtype=elem_dtype, approx_gelu=approx_gelu)

    out = pl.pallas_call(
        kernel,
        out_shape=jax.ShapeDtypeStruct((M_pad, dm_pad), out_dtype),
        grid_spec=pltpu.PrefetchScalarGridSpec(
            num_scalar_prefetch=0,
            grid=(n_rows, 2 * n_dff),
            in_specs=[x_spec, w1_spec, b1_spec, g_spec, be_spec, w2_spec,
                      b2_spec],
            out_specs=out_spec,
            scratch_shapes=scratch),
        compiler_params=pltpu.CompilerParams(
            dimension_semantics=("parallel", "arbitrary"),
            vmem_limit_bytes=vmem_limit),
        cost_estimate=cost,
    )(x2d, w1_p, b1_p, g_p, be_p, w2_p, b2_p)

    return out[:M, :d_model].reshape(B, S, d_model)


def feed_forward(x, w1, b1, gamma, beta, w2, b2, *, tm=None, tk=None,
                 out_dtype=None, approx_gelu=True):
    """FeedForward forward pass. Weights in PyTorch (in, out) layout (= W.T).

    Returns an async JAX value (no host sync); dropout is eval-mode identity.
    """
    out_dtype = None if out_dtype is None else jnp.dtype(out_dtype)
    return _feed_forward_impl(x, w1, b1, gamma, beta, w2, b2, tm=tm, tk=tk,
                              out_dtype=out_dtype, approx_gelu=approx_gelu)


# --------------------------------------------------------------------------
# Reference + test
# --------------------------------------------------------------------------
def _reference(x, w1, b1, gamma, beta, w2, b2, approx_gelu=True):
    # Mimics kernel numerics: bf16 matmul operands (f32 accumulation), bf16
    # stashed hidden activations, folded-affine LayerNorm, tanh GELU.
    xb = x.astype(jnp.bfloat16).astype(jnp.float32)
    w1b = w1.astype(jnp.bfloat16).astype(jnp.float32)
    w2b = w2.astype(jnp.bfloat16).astype(jnp.float32)
    h = xb @ w1b + b1
    mu = jnp.mean(h, axis=-1, keepdims=True)
    var = jnp.mean(h * h, axis=-1, keepdims=True) - mu * mu
    rstd = 1.0 / jnp.sqrt(var + _LN_EPS)
    hb = h.astype(jnp.bfloat16).astype(jnp.float32)
    hn = (hb * rstd - mu * rstd) * gamma + beta
    if approx_gelu:
        a = 0.5 * hn * (1.0 + jnp.tanh(_SQRT_2_OVER_PI
                                       * (hn + _GELU_C * hn ** 3)))
    else:
        a = 0.5 * hn * (1.0 + jax.lax.erf(hn * _INV_SQRT2))
    ab = a.astype(jnp.bfloat16).astype(jnp.float32)
    return ab @ w2b + b2


if __name__ == "__main__":
    B, S, d_model = 2, 8, 32
    dff = d_model * 4

    key = jax.random.PRNGKey(0)
    kx, kw1, kb1, kw2, kb2 = jax.random.split(key, 5)

    x = jax.random.normal(kx, (B, S, d_model), dtype=jnp.float32)

    bound1 = 1.0 / (d_model ** 0.5)
    w1 = jax.random.uniform(kw1, (d_model, dff), minval=-bound1, maxval=bound1,
                            dtype=jnp.float32)
    b1 = jax.random.uniform(kb1, (dff,), minval=-bound1, maxval=bound1,
                            dtype=jnp.float32)
    bound2 = 1.0 / (dff ** 0.5)
    w2 = jax.random.uniform(kw2, (dff, d_model), minval=-bound2, maxval=bound2,
                            dtype=jnp.float32)
    b2 = jax.random.uniform(kb2, (d_model,), minval=-bound2, maxval=bound2,
                            dtype=jnp.float32)
    gamma = jnp.ones((dff,), dtype=jnp.float32)   # nn.LayerNorm defaults
    beta = jnp.zeros((dff,), dtype=jnp.float32)

    out = feed_forward(x, w1, b1, gamma, beta, w2, b2)
    out = jax.block_until_ready(out)

    ref = _reference(x, w1, b1, gamma, beta, w2, b2)
    assert out.shape == (B, S, d_model)
    max_err = float(jnp.max(jnp.abs(out - ref)))
    assert jnp.allclose(out, ref, atol=2e-2, rtol=2e-2), max_err

    print("KERNEL_OK")
</pallas_src>

<mosaic_0001>
module attributes {stable_mosaic.version = 11 : i64} {
  func.func @ffn_kernel(%arg0: i32, %arg1: i32, %arg2: memref<16x128xbf16, #tpu.memory_space<vmem>>, %arg3: memref<128x128xbf16, #tpu.memory_space<vmem>>, %arg4: memref<1x128xf32, #tpu.memory_space<vmem>>, %arg5: memref<1x128xf32, #tpu.memory_space<vmem>>, %arg6: memref<1x128xf32, #tpu.memory_space<vmem>>, %arg7: memref<128x128xbf16, #tpu.memory_space<vmem>>, %arg8: memref<1x128xf32, #tpu.memory_space<vmem>>, %arg9: memref<16x128xf32, #tpu.memory_space<vmem>>, %arg10: memref<1x16x128xbf16, #tpu.memory_space<vmem>>, %arg11: memref<16x1xf32, #tpu.memory_space<vmem>>, %arg12: memref<16x1xf32, #tpu.memory_space<vmem>>, %arg13: memref<16x128xf32, #tpu.memory_space<vmem>>) attributes {dimension_semantics = [#tpu.dimension_semantics<parallel>, #tpu.dimension_semantics<arbitrary>], iteration_bounds = array<i64: 1, 2>, scalar_prefetch = 0 : i64, scratch_operands = 4 : i64, tpu.core_type = #tpu.core_type<tc>, window_params = [{transform_indices = @transform_0, window_bounds = array<i64: 16, 128>}, {transform_indices = @transform_1, window_bounds = array<i64: 128, 128>}, {transform_indices = @transform_2, window_bounds = array<i64: 1, 128>}, {transform_indices = @transform_3, window_bounds = array<i64: 1, 128>}, {transform_indices = @transform_4, window_bounds = array<i64: 1, 128>}, {transform_indices = @transform_5, window_bounds = array<i64: 128, 128>}, {pipeline_mode = #tpu.pipeline_mode<synchronous>, transform_indices = @transform_6, window_bounds = array<i64: 1, 128>}, {transform_indices = @transform_7, window_bounds = array<i64: 16, 128>}]} {
    %c0_i32 = arith.constant 0 : i32
    %0 = arith.cmpi eq, %arg1, %c0_i32 : i32
    %1 = arith.extui %0 : i1 to i32
    %c0_i32_0 = arith.constant 0 : i32
    %2 = arith.cmpi ne, %1, %c0_i32_0 : i32
    scf.if %2 {
      %cst = arith.constant 0.000000e+00 : f32
      %9 = vector.broadcast %cst : f32 to vector<16x1xf32>
      %c0 = arith.constant 0 : index
      %c0_4 = arith.constant 0 : index
      %10 = vector.load %arg11[%c0, %c0_4] : memref<16x1xf32, #tpu.memory_space<vmem>>, vector<16x1xf32>
      tpu.vector_store %arg11[%c0, %c0_4], %9 {strides = array<i32>} : memref<16x1xf32, #tpu.memory_space<vmem>>, vector<16x1xf32>,
      %cst_5 = arith.constant 0.000000e+00 : f32
      %11 = vector.broadcast %cst_5 : f32 to vector<16x1xf32>
      %c0_6 = arith.constant 0 : index
      %c0_7 = arith.constant 0 : index
      %12 = vector.load %arg12[%c0_6, %c0_7] : memref<16x1xf32, #tpu.memory_space<vmem>>, vector<16x1xf32>
      tpu.vector_store %arg12[%c0_6, %c0_7], %11 {strides = array<i32>} : memref<16x1xf32, #tpu.memory_space<vmem>>, vector<16x1xf32>,
      %cst_8 = arith.constant 0.000000e+00 : f32
      %13 = vector.broadcast %cst_8 : f32 to vector<16x128xf32>
      %c0_9 = arith.constant 0 : index
      %c0_10 = arith.constant 0 : index
      %14 = vector.load %arg13[%c0_9, %c0_10] : memref<16x128xf32, #tpu.memory_space<vmem>>, vector<16x128xf32>
      tpu.vector_store %arg13[%c0_9, %c0_10], %13 {strides = array<i32>} : memref<16x128xf32, #tpu.memory_space<vmem>>, vector<16x128xf32>,
    } else {
    }
    %c1_i32 = arith.constant 1 : i32
    %3 = arith.cmpi slt, %arg1, %c1_i32 : i32
    %4 = arith.extui %3 : i1 to i32
    %c0_i32_1 = arith.constant 0 : i32
    %5 = arith.cmpi ne, %4, %c0_i32_1 : i32
    scf.if %5 {
      %c0 = arith.constant 0 : index
      %c0_4 = arith.constant 0 : index
      %9 = vector.load %arg2[%c0, %c0_4] : memref<16x128xbf16, #tpu.memory_space<vmem>>, vector<16x128xbf16>
      %c0_5 = arith.constant 0 : index
      %c0_6 = arith.constant 0 : index
      %10 = vector.load %arg3[%c0_5, %c0_6] : memref<128x128xbf16, #tpu.memory_space<vmem>>, vector<128x128xbf16>
      %cst = arith.constant dense<0.000000e+00> : vector<16x128xf32>
      %11 = tpu.matmul %9, %10, %cst {dimension_numbers = #tpu.dot_dimension_numbers<[1], [0], [0], [1], [0, 0, 1, 1], [], []>} : vector<16x128xbf16>, vector<128x128xbf16>, vector<16x128xf32> -> vector<16x128xf32>
      %c0_7 = arith.constant 0 : index
      %c0_8 = arith.constant 0 : index
      %12 = vector.load %arg4[%c0_7, %c0_8] : memref<1x128xf32, #tpu.memory_space<vmem>>, vector<1x128xf32>
      %13 = vector.broadcast %12 : vector<1x128xf32> to vector<16x128xf32>
      %14 = arith.addf %11, %13 : vector<16x128xf32>
      %c0_9 = arith.constant 0 : index
      %c0_10 = arith.constant 0 : index
      %15 = vector.load %arg11[%c0_9, %c0_10] : memref<16x1xf32, #tpu.memory_space<vmem>>, vector<16x1xf32>
      %cst_11 = arith.constant dense<0.000000e+00> : vector<16xf32>
      %16 = vector.multi_reduction <add>, %14, %cst_11 [1] : vector<16x128xf32> to vector<16xf32>
      %17 = vector.shape_cast %16 : vector<16xf32> to vector<16x1xf32>
      %18 = arith.addf %15, %17 : vector<16x1xf32>
      %c0_12 = arith.constant 0 : index
      %c0_13 = arith.constant 0 : index
      %19 = vector.load %arg11[%c0_12, %c0_13] : memref<16x1xf32, #tpu.memory_space<vmem>>, vector<16x1xf32>
      tpu.vector_store %arg11[%c0_12, %c0_13], %18 {strides = array<i32>} : memref<16x1xf32, #tpu.memory_space<vmem>>, vector<16x1xf32>,
      %c0_14 = arith.constant 0 : index
      %c0_15 = arith.constant 0 : index
      %20 = vector.load %arg12[%c0_14, %c0_15] : memref<16x1xf32, #tpu.memory_space<vmem>>, vector<16x1xf32>
      %21 = arith.mulf %14, %14 : vector<16x128xf32>
      %cst_16 = arith.constant dense<0.000000e+00> : vector<16xf32>
      %22 = vector.multi_reduction <add>, %21, %cst_16 [1] : vector<16x128xf32> to vector<16xf32>
      %23 = vector.shape_cast %22 : vector<16xf32> to vector<16x1xf32>
      %24 = arith.addf %20, %23 : vector<16x1xf32>
      %c0_17 = arith.constant 0 : index
      %c0_18 = arith.constant 0 : index
      %25 = vector.load %arg12[%c0_17, %c0_18] : memref<16x1xf32, #tpu.memory_space<vmem>>, vector<16x1xf32>
      tpu.vector_store %arg12[%c0_17, %c0_18], %24 {strides = array<i32>} : memref<16x1xf32, #tpu.memory_space<vmem>>, vector<16x1xf32>,
      %26 = arith.truncf %14 : vector<16x128xf32> to vector<16x128xbf16>
      %27 = arith.index_cast %arg1 : i32 to index
      %c0_19 = arith.constant 0 : index
      %c0_20 = arith.constant 0 : index
      %28 = vector.load %arg10[%27, %c0_19, %c0_20] : memref<1x16x128xbf16, #tpu.memory_space<vmem>>, vector<1x16x128xbf16>
      %29 = vector.shape_cast %28 : vector<1x16x128xbf16> to vector<16x128xbf16>
      %30 = vector.shape_cast %26 : vector<16x128xbf16> to vector<1x16x128xbf16>
      tpu.vector_store %arg10[%27, %c0_19, %c0_20], %30 {strides = array<i32>} : memref<1x16x128xbf16, #tpu.memory_space<vmem>>, vector<1x16x128xbf16>,
    } else {
    }
    %c1_i32_2 = arith.constant 1 : i32
    %6 = arith.cmpi sge, %arg1, %c1_i32_2 : i32
    %7 = arith.extui %6 : i1 to i32
    %c0_i32_3 = arith.constant 0 : i32
    %8 = arith.cmpi ne, %7, %c0_i32_3 : i32
    scf.if %8 {
      %c1_i32_4 = arith.constant 1 : i32
      %9 = arith.subi %arg1, %c1_i32_4 : i32
      %c1_i32_5 = arith.constant 1 : i32
      %10 = arith.cmpi eq, %arg1, %c1_i32_5 : i32
      %11 = arith.extui %10 : i1 to i32
      %c0_i32_6 = arith.constant 0 : i32
      %12 = arith.cmpi ne, %11, %c0_i32_6 : i32
      scf.if %12 {
        %c0_28 = arith.constant 0 : index
        %c0_29 = arith.constant 0 : index
        %51 = vector.load %arg11[%c0_28, %c0_29] : memref<16x1xf32, #tpu.memory_space<vmem>>, vector<16x1xf32>
        %cst_30 = arith.constant 7.812500e-03 : f32
        %52 = vector.broadcast %cst_30 : f32 to vector<16x1xf32>
        %53 = arith.mulf %51, %52 : vector<16x1xf32>
        %c0_31 = arith.constant 0 : index
        %c0_32 = arith.constant 0 : index
        %54 = vector.load %arg12[%c0_31, %c0_32] : memref<16x1xf32, #tpu.memory_space<vmem>>, vector<16x1xf32>
        %cst_33 = arith.constant 7.812500e-03 : f32
        %55 = vector.broadcast %cst_33 : f32 to vector<16x1xf32>
        %56 = arith.mulf %54, %55 : vector<16x1xf32>
        %57 = arith.mulf %53, %53 : vector<16x1xf32>
        %58 = arith.subf %56, %57 : vector<16x1xf32>
        %cst_34 = arith.constant 9.99999974E-6 : f32
        %59 = vector.broadcast %cst_34 : f32 to vector<16x1xf32>
        %60 = arith.addf %58, %59 : vector<16x1xf32>
        %61 = math.rsqrt %60 : vector<16x1xf32>
        %62 = arith.mulf %53, %61 : vector<16x1xf32>
        %c0_35 = arith.constant 0 : index
        %c0_36 = arith.constant 0 : index
        %63 = vector.load %arg11[%c0_35, %c0_36] : memref<16x1xf32, #tpu.memory_space<vmem>>, vector<16x1xf32>
        tpu.vector_store %arg11[%c0_35, %c0_36], %62 {strides = array<i32>} : memref<16x1xf32, #tpu.memory_space<vmem>>, vector<16x1xf32>,
        %c0_37 = arith.constant 0 : index
        %c0_38 = arith.constant 0 : index
        %64 = vector.load %arg12[%c0_37, %c0_38] : memref<16x1xf32, #tpu.memory_space<vmem>>, vector<16x1xf32>
        tpu.vector_store %arg12[%c0_37, %c0_38], %61 {strides = array<i32>} : memref<16x1xf32, #tpu.memory_space<vmem>>, vector<16x1xf32>,
      } else {
      }
      %c0 = arith.constant 0 : index
      %c0_7 = arith.constant 0 : index
      %13 = vector.load %arg11[%c0, %c0_7] : memref<16x1xf32, #tpu.memory_space<vmem>>, vector<16x1xf32>
      %c0_8 = arith.constant 0 : index
      %c0_9 = arith.constant 0 : index
      %14 = vector.load %arg12[%c0_8, %c0_9] : memref<16x1xf32, #tpu.memory_space<vmem>>, vector<16x1xf32>
      %15 = arith.index_cast %9 : i32 to index
      %c0_10 = arith.constant 0 : index
      %c0_11 = arith.constant 0 : index
      %16 = vector.load %arg10[%15, %c0_10, %c0_11] : memref<1x16x128xbf16, #tpu.memory_space<vmem>>, vector<1x16x128xbf16>
      %17 = vector.shape_cast %16 : vector<1x16x128xbf16> to vector<16x128xbf16>
      %18 = arith.extf %17 : vector<16x128xbf16> to vector<16x128xf32>
      %19 = vector.broadcast %14 : vector<16x1xf32> to vector<16x128xf32>
      %20 = arith.mulf %18, %19 : vector<16x128xf32>
      %21 = vector.broadcast %13 : vector<16x1xf32> to vector<16x128xf32>
      %22 = arith.subf %20, %21 : vector<16x128xf32>
      %c0_12 = arith.constant 0 : index
      %c0_13 = arith.constant 0 : index
      %23 = vector.load %arg5[%c0_12, %c0_13] : memref<1x128xf32, #tpu.memory_space<vmem>>, vector<1x128xf32>
      %24 = vector.broadcast %23 : vector<1x128xf32> to vector<16x128xf32>
      %25 = arith.mulf %22, %24 : vector<16x128xf32>
      %c0_14 = arith.constant 0 : index
      %c0_15 = arith.constant 0 : index
      %26 = vector.load %arg6[%c0_14, %c0_15] : memref<1x128xf32, #tpu.memory_space<vmem>>, vector<1x128xf32>
      %27 = vector.broadcast %26 : vector<1x128xf32> to vector<16x128xf32>
      %28 = arith.addf %25, %27 : vector<16x128xf32>
      %cst = arith.constant 4.471500e-02 : f32
      %29 = vector.broadcast %cst : f32 to vector<16x128xf32>
      %30 = arith.mulf %29, %28 : vector<16x128xf32>
      %31 = arith.mulf %30, %28 : vector<16x128xf32>
      %32 = arith.mulf %31, %28 : vector<16x128xf32>
      %33 = arith.addf %28, %32 : vector<16x128xf32>
      %cst_16 = arith.constant 0.797884583 : f32
      %34 = vector.broadcast %cst_16 : f32 to vector<16x128xf32>
      %35 = arith.mulf %34, %33 : vector<16x128xf32>
      %cst_17 = arith.constant 5.000000e-01 : f32
      %36 = vector.broadcast %cst_17 : f32 to vector<16x128xf32>
      %37 = arith.mulf %36, %28 : vector<16x128xf32>
      %38 = math.tanh %35 : vector<16x128xf32>
      %cst_18 = arith.constant 1.000000e+00 : f32
      %39 = vector.broadcast %cst_18 : f32 to vector<16x128xf32>
      %40 = arith.addf %39, %38 : vector<16x128xf32>
      %41 = arith.mulf %37, %40 : vector<16x128xf32>
      %c0_19 = arith.constant 0 : index
      %c0_20 = arith.constant 0 : index
      %42 = vector.load %arg13[%c0_19, %c0_20] : memref<16x128xf32, #tpu.memory_space<vmem>>, vector<16x128xf32>
      %43 = arith.truncf %41 : vector<16x128xf32> to vector<16x128xbf16>
      %c0_21 = arith.constant 0 : index
      %c0_22 = arith.constant 0 : index
      %44 = vector.load %arg7[%c0_21, %c0_22] : memref<128x128xbf16, #tpu.memory_space<vmem>>, vector<128x128xbf16>
      %cst_23 = arith.constant dense<0.000000e+00> : vector<16x128xf32>
      %45 = tpu.matmul %43, %44, %cst_23 {dimension_numbers = #tpu.dot_dimension_numbers<[1], [0], [0], [1], [0, 0, 1, 1], [], []>} : vector<16x128xbf16>, vector<128x128xbf16>, vector<16x128xf32> -> vector<16x128xf32>
      %46 = arith.addf %42, %45 : vector<16x128xf32>
      %c0_24 = arith.constant 0 : index
      %c0_25 = arith.constant 0 : index
      %47 = vector.load %arg13[%c0_24, %c0_25] : memref<16x128xf32, #tpu.memory_space<vmem>>, vector<16x128xf32>
      tpu.vector_store %arg13[%c0_24, %c0_25], %46 {strides = array<i32>} : memref<16x128xf32, #tpu.memory_space<vmem>>, vector<16x128xf32>,
      %c1_i32_26 = arith.constant 1 : i32
      %48 = arith.cmpi eq, %arg1, %c1_i32_26 : i32
      %49 = arith.extui %48 : i1 to i32
      %c0_i32_27 = arith.constant 0 : i32
      %50 = arith.cmpi ne, %49, %c0_i32_27 : i32
      scf.if %50 {
        %c0_28 = arith.constant 0 : index
        %c0_29 = arith.constant 0 : index
        %51 = vector.load %arg13[%c0_28, %c0_29] : memref<16x128xf32, #tpu.memory_space<vmem>>, vector<16x128xf32>
        %c0_30 = arith.constant 0 : index
        %c0_31 = arith.constant 0 : index
        %52 = vector.load %arg8[%c0_30, %c0_31] : memref<1x128xf32, #tpu.memory_space<vmem>>, vector<1x128xf32>
        %53 = vector.broadcast %52 : vector<1x128xf32> to vector<16x128xf32>
        %54 = arith.addf %51, %53 : vector<16x128xf32>
        %c0_32 = arith.constant 0 : index
        %c0_33 = arith.constant 0 : index
        %55 = vector.load %arg9[%c0_32, %c0_33] : memref<16x128xf32, #tpu.memory_space<vmem>>, vector<16x128xf32>
        tpu.vector_store %arg9[%c0_32, %c0_33], %54 {strides = array<i32>} : memref<16x128xf32, #tpu.memory_space<vmem>>, vector<16x128xf32>,
      } else {
      }
    } else {
    }
    return
  }
  func.func @transform_0(%arg0: i32, %arg1: i32) -> (i32, i32) {
    %c0_i32 = arith.constant 0 : i32
    %c0_i32_0 = arith.constant 0 : i32
    return %arg0, %c0_i32 : i32, i32
  }
  func.func @transform_1(%arg0: i32, %arg1: i32) -> (i32, i32) {
    %c0_i32 = arith.constant 0 : i32
    %0 = arith.minsi %arg1, %c0_i32 : i32
    %c0_i32_0 = arith.constant 0 : i32
    %c0_i32_1 = arith.constant 0 : i32
    return %c0_i32_0, %0 : i32, i32
  }
  func.func @transform_2(%arg0: i32, %arg1: i32) -> (i32, i32) {
    %c0_i32 = arith.constant 0 : i32
    %0 = arith.minsi %arg1, %c0_i32 : i32
    %c0_i32_0 = arith.constant 0 : i32
    %c0_i32_1 = arith.constant 0 : i32
    return %c0_i32_0, %0 : i32, i32
  }
  func.func @transform_3(%arg0: i32, %arg1: i32) -> (i32, i32) {
    %c1_i32 = arith.constant 1 : i32
    %0 = arith.subi %arg1, %c1_i32 : i32
    %c0_i32 = arith.constant 0 : i32
    %1 = arith.maxsi %0, %c0_i32 : i32
    %c0_i32_0 = arith.constant 0 : i32
    %c0_i32_1 = arith.constant 0 : i32
    return %c0_i32_0, %1 : i32, i32
  }
  func.func @transform_4(%arg0: i32, %arg1: i32) -> (i32, i32) {
    %c1_i32 = arith.constant 1 : i32
    %0 = arith.subi %arg1, %c1_i32 : i32
    %c0_i32 = arith.constant 0 : i32
    %1 = arith.maxsi %0, %c0_i32 : i32
    %c0_i32_0 = arith.constant 0 : i32
    %c0_i32_1 = arith.constant 0 : i32
    return %c0_i32_0, %1 : i32, i32
  }
  func.func @transform_5(%arg0: i32, %arg1: i32) -> (i32, i32) {
    %c1_i32 = arith.constant 1 : i32
    %0 = arith.subi %arg1, %c1_i32 : i32
    %c0_i32 = arith.constant 0 : i32
    %1 = arith.maxsi %0, %c0_i32 : i32
    %c0_i32_0 = arith.constant 0 : i32
    %c0_i32_1 = arith.constant 0 : i32
    return %1, %c0_i32_0 : i32, i32
  }
  func.func @transform_6(%arg0: i32, %arg1: i32) -> (i32, i32) {
    %c0_i32 = arith.constant 0 : i32
    %c0_i32_0 = arith.constant 0 : i32
    %c0_i32_1 = arith.constant 0 : i32
    return %c0_i32, %c0_i32_0 : i32, i32
  }
  func.func @transform_7(%arg0: i32, %arg1: i32) -> (i32, i32) {
    %c0_i32 = arith.constant 0 : i32
    %c0_i32_0 = arith.constant 0 : i32
    return %arg0, %c0_i32 : i32, i32
  }
}

</mosaic_0001>

<llo_original>
// kernel: _feed_forward_impl.1
$region0: #{_feed_forward_impl.1}
  #allocation0 [shape = 'u32[]', space=smem, size = 0x4, offset = 0x4, fixed_abs, tag = 'smem constant byte address 0x4 - core index']
  #allocation1 [shape = 'u32[72,128]{1,0:T(1,128)}', space=vmem, size = 0x9000, scoped, tag = 'internal scratch']
  #allocation2 [shape = 'bf16[1,16,128]{2,1,0:T(8,128)(2,1)}', space=vmem, size = 0x1000, scoped, tag = 'scratch operand']
  #allocation3 [shape = 'f32[16,1]{1,0:T(8,128)}', space=vmem, size = 0x2000, scoped, tag = 'scratch operand']
  #allocation4 [shape = 'f32[16,1]{1,0:T(8,128)}', space=vmem, size = 0x2000, scoped, tag = 'scratch operand']
  #allocation5 [shape = 'f32[16,128]{1,0:T(8,128)}', space=vmem, size = 0x2000, scoped, tag = 'scratch operand']
  %s0 = inlined_call_operand.vmem [shape: bf16[16,128], index: 0, kind: input, shape index: {}]
  %s1 = inlined_call_operand.vmem [shape: bf16[128,128], index: 1, kind: input, shape index: {}]
  %s2 = inlined_call_operand.vmem [shape: f32[1,128], index: 2, kind: input, shape index: {}]
  %s3 = inlined_call_operand.vmem [shape: f32[1,128], index: 3, kind: input, shape index: {}]
  %s4 = inlined_call_operand.vmem [shape: f32[1,128], index: 4, kind: input, shape index: {}]
  %s5 = inlined_call_operand.vmem [shape: bf16[128,128], index: 5, kind: input, shape index: {}]
  %s6 = inlined_call_operand.vmem [shape: f32[1,128], index: 6, kind: input, shape index: {}]
  %s7 = inlined_call_operand.vmem [shape: f32[16,128], index: 7, kind: output, shape index: {}]
  %s8 = sld [smem:[#allocation0]]
  $region81: #{_feed_forward_impl.1} parent=0
    _
  %s10 = ssub.s32 1, %s8
  %s11 = scalar_select 0, %s10, %s8
  loop: start=0, step=1, limit=4
  $region2: #{_feed_forward_impl.1} parent=0 // loop_pre_header
    _
  $region3: #{_feed_forward_impl.1} parent=0 // loop_header
    %s13 = sphi 0, %s17
    %p14 = scmp.ge.s32.totalorder %s13, 4
    %s20 = sphi 0, %s32
    %s21 = sphi 0, %s28
    %s22 = sphi 0, %s20
    %s23 = sphi 0, %s21
    %s24 = sphi 0, %s22
    %s25 = sphi 0, %s23
    %s35 = sphi 0, %s37
    %s38 = sphi 0, %s35
    %s39 = sphi 0, %s38
    %s55 = sphi 0, %s39
    %s65 = sphi 0, %s67
    %s68 = sphi 0, %s65
    %s69 = sphi 0, %s68
    %s85 = sphi 0, %s69
    %s95 = sphi 0, %s97
    %s98 = sphi 0, %s95
    %s99 = sphi 0, %s98
    %s115 = sphi 0, %s99
    %s127 = sphi 0, %s129
    %s130 = sphi 0, %s127
    %s131 = sphi 0, %s130
    %s147 = sphi 0, %s131
    %s159 = sphi 0, %s161
    %s162 = sphi 0, %s159
    %s163 = sphi 0, %s162
    %s179 = sphi 0, %s163
    %s191 = sphi 0, %s193
    %s194 = sphi 0, %s191
    %s195 = sphi 0, %s194
    %s211 = sphi 0, %s195
    %s215 = sphi 0, %s215
    %s217 = sphi 0, %s215
    %s218 = sphi 0, %s217
    %s232 = sphi 0, %s218
    %s238 = sphi 0, %s240
    %s241 = sphi 0, %s238
    %s242 = sphi 0, %s241
    %s258 = sphi 0, %s242
  $region4: #{_feed_forward_impl.1} parent=0 // loop_header_branch
    %16 = sbr.rel (%p14) target = $region8
  $region5: #{_feed_forward_impl.1} parent=0 // loop_body
    %s18 = ssub.s32 %s13, 1
    %s19 = ssub.s32 %s13, 2
    %s26 = sadd.s32 1, %s21
    %p27 = scmp.ge.s32.totalorder %s26, 2
    %s28 = scalar_select %p27, 0, %s26
    %s29 = sadd.s32 1, %s20
    %s30 = scalar_select %p27, %s29, %s20
    %p31 = scmp.ge.s32.totalorder %s30, 1
    %s32 = scalar_select %p31, 0, %s30
    %s33 = ssub.s32 %s20, %s32
    %p34 = scmp.eq.s32.totalorder %s33, 0
    %s36 = sadd.s32 %s35, 1
    %s37 = scalar_select %p34, %s35, %s36
    %p40 = pneg %p34
    %p41 = scmp.eq.s32.totalorder %s13, 1
    %p42 = por %p40, %p41
    %p43 = scmp.ne.s32.totalorder %s35, %s38
    %p44 = scmp.eq.s32.totalorder %s13, 0
    %p45 = por %p43, %p44
    %p46 = scmp.ne.s32.totalorder %s35, %s38
    %p47 = scmp.eq.s32.totalorder %s18, 1
    %p48 = por %p46, %p47
    %p49 = scmp.ne.s32.totalorder %s38, %s39
    %p50 = scmp.eq.s32.totalorder %s18, 0
    %p51 = por %p49, %p50
    %p52 = scmp.ne.s32.totalorder %s38, %s39
    %p53 = scmp.eq.s32.totalorder %s19, 1
    %p54 = por %p52, %p53
    %p56 = scmp.ne.s32.totalorder %s39, %s55
    %p57 = scmp.eq.s32.totalorder %s19, 0
    %p58 = por %p56, %p57
    %p59 = scmp.lt.s32.totalorder %s21, 0
    %s60 = scalar_select %p59, %s21, 0
    %p61 = scmp.lt.s32.totalorder %s28, 0
    %s62 = scalar_select %p61, %s28, 0
    %s63 = ssub.s32 %s60, %s62
    %p64 = scmp.eq.s32.totalorder %s63, 0
    %s66 = sadd.s32 %s65, 1
    %s67 = scalar_select %p64, %s65, %s66
    %p70 = pneg %p64
    %p71 = scmp.eq.s32.totalorder %s13, 1
    %p72 = por %p70, %p71
    %p73 = scmp.ne.s32.totalorder %s65, %s68
    %p74 = scmp.eq.s32.totalorder %s13, 0
    %p75 = por %p73, %p74
    %p76 = scmp.ne.s32.totalorder %s65, %s68
    %p77 = scmp.eq.s32.totalorder %s18, 1
    %p78 = por %p76, %p77
    %p79 = scmp.ne.s32.totalorder %s68, %s69
    %p80 = scmp.eq.s32.totalorder %s18, 0
    %p81 = por %p79, %p80
    %p82 = scmp.ne.s32.totalorder %s68, %s69
    %p83 = scmp.eq.s32.totalorder %s19, 1
    %p84 = por %p82, %p83
    %p86 = scmp.ne.s32.totalorder %s69, %s85
    %p87 = scmp.eq.s32.totalorder %s19, 0
    %p88 = por %p86, %p87
    %p89 = scmp.lt.s32.totalorder %s21, 0
    %s90 = scalar_select %p89, %s21, 0
    %p91 = scmp.lt.s32.totalorder %s28, 0
    %s92 = scalar_select %p91, %s28, 0
    %s93 = ssub.s32 %s90, %s92
    %p94 = scmp.eq.s32.totalorder %s93, 0
    %s96 = sadd.s32 %s95, 1
    %s97 = scalar_select %p94, %s95, %s96
    %p100 = pneg %p94
    %p101 = scmp.eq.s32.totalorder %s13, 1
    %p102 = por %p100, %p101
    %p103 = scmp.ne.s32.totalorder %s95, %s98
    %p104 = scmp.eq.s32.totalorder %s13, 0
    %p105 = por %p103, %p104
    %p106 = scmp.ne.s32.totalorder %s95, %s98
    %p107 = scmp.eq.s32.totalorder %s18, 1
    %p108 = por %p106, %p107
    %p109 = scmp.ne.s32.totalorder %s98, %s99
    %p110 = scmp.eq.s32.totalorder %s18, 0
    %p111 = por %p109, %p110
    %p112 = scmp.ne.s32.totalorder %s98, %s99
    %p113 = scmp.eq.s32.totalorder %s19, 1
    %p114 = por %p112, %p113
    %p116 = scmp.ne.s32.totalorder %s99, %s115
    %p117 = scmp.eq.s32.totalorder %s19, 0
    %p118 = por %p116, %p117
    %s119 = ssub.s32 %s21, 1
    %p120 = scmp.gt.s32.totalorder %s119, 0
    %s121 = scalar_select %p120, %s119, 0
    %s122 = ssub.s32 %s28, 1
    %p123 = scmp.gt.s32.totalorder %s122, 0
    %s124 = scalar_select %p123, %s122, 0
    %s125 = ssub.s32 %s121, %s124
    %p126 = scmp.eq.s32.totalorder %s125, 0
    %s128 = sadd.s32 %s127, 1
    %s129 = scalar_select %p126, %s127, %s128
    %p132 = pneg %p126
    %p133 = scmp.eq.s32.totalorder %s13, 1
    %p134 = por %p132, %p133
    %p135 = scmp.ne.s32.totalorder %s127, %s130
    %p136 = scmp.eq.s32.totalorder %s13, 0
    %p137 = por %p135, %p136
    %p138 = scmp.ne.s32.totalorder %s127, %s130
    %p139 = scmp.eq.s32.totalorder %s18, 1
    %p140 = por %p138, %p139
    %p141 = scmp.ne.s32.totalorder %s130, %s131
    %p142 = scmp.eq.s32.totalorder %s18, 0
    %p143 = por %p141, %p142
    %p144 = scmp.ne.s32.totalorder %s130, %s131
    %p145 = scmp.eq.s32.totalorder %s19, 1
    %p146 = por %p144, %p145
    %p148 = scmp.ne.s32.totalorder %s131, %s147
    %p149 = scmp.eq.s32.totalorder %s19, 0
    %p150 = por %p148, %p149
    %s151 = ssub.s32 %s21, 1
    %p152 = scmp.gt.s32.totalorder %s151, 0
    %s153 = scalar_select %p152, %s151, 0
    %s154 = ssub.s32 %s28, 1
    %p155 = scmp.gt.s32.totalorder %s154, 0
    %s156 = scalar_select %p155, %s154, 0
    %s157 = ssub.s32 %s153, %s156
    %p158 = scmp.eq.s32.totalorder %s157, 0
    %s160 = sadd.s32 %s159, 1
    %s161 = scalar_select %p158, %s159, %s160
    %p164 = pneg %p158
    %p165 = scmp.eq.s32.totalorder %s13, 1
    %p166 = por %p164, %p165
    %p167 = scmp.ne.s32.totalorder %s159, %s162
    %p168 = scmp.eq.s32.totalorder %s13, 0
    %p169 = por %p167, %p168
    %p170 = scmp.ne.s32.totalorder %s159, %s162
    %p171 = scmp.eq.s32.totalorder %s18, 1
    %p172 = por %p170, %p171
    %p173 = scmp.ne.s32.totalorder %s162, %s163
    %p174 = scmp.eq.s32.totalorder %s18, 0
    %p175 = por %p173, %p174
    %p176 = scmp.ne.s32.totalorder %s162, %s163
    %p177 = scmp.eq.s32.totalorder %s19, 1
    %p178 = por %p176, %p177
    %p180 = scmp.ne.s32.totalorder %s163, %s179
    %p181 = scmp.eq.s32.totalorder %s19, 0
    %p182 = por %p180, %p181
    %s183 = ssub.s32 %s21, 1
    %p184 = scmp.gt.s32.totalorder %s183, 0
    %s185 = scalar_select %p184, %s183, 0
    %s186 = ssub.s32 %s28, 1
    %p187 = scmp.gt.s32.totalorder %s186, 0
    %s188 = scalar_select %p187, %s186, 0
    %s189 = ssub.s32 %s185, %s188
    %p190 = scmp.eq.s32.totalorder %s189, 0
    %s192 = sadd.s32 %s191, 1
    %s193 = scalar_select %p190, %s191, %s192
    %p196 = pneg %p190
    %p197 = scmp.eq.s32.totalorder %s13, 1
    %p198 = por %p196, %p197
    %p199 = scmp.ne.s32.totalorder %s191, %s194
    %p200 = scmp.eq.s32.totalorder %s13, 0
    %p201 = por %p199, %p200
    %p202 = scmp.ne.s32.totalorder %s191, %s194
    %p203 = scmp.eq.s32.totalorder %s18, 1
    %p204 = por %p202, %p203
    %p205 = scmp.ne.s32.totalorder %s194, %s195
    %p206 = scmp.eq.s32.totalorder %s18, 0
    %p207 = por %p205, %p206
    %p208 = scmp.ne.s32.totalorder %s194, %s195
    %p209 = scmp.eq.s32.totalorder %s19, 1
    %p210 = por %p208, %p209
    %p212 = scmp.ne.s32.totalorder %s195, %s211
    %p213 = scmp.eq.s32.totalorder %s19, 0
    %p214 = por %p212, %p213
    %s216 = sadd.s32 %s215, 1
    %p219 = scmp.eq.s32.totalorder %s13, 1
    %p220 = scmp.ne.s32.totalorder %s215, %s217
    %p221 = scmp.eq.s32.totalorder %s13, 0
    %p222 = por %p220, %p221
    %p223 = scmp.ne.s32.totalorder %s215, %s217
    %p224 = scmp.eq.s32.totalorder %s18, 1
    %p225 = por %p223, %p224
    %p226 = scmp.ne.s32.totalorder %s217, %s218
    %p227 = scmp.eq.s32.totalorder %s18, 0
    %p228 = por %p226, %p227
    %p229 = scmp.ne.s32.totalorder %s217, %s218
    %p230 = scmp.eq.s32.totalorder %s19, 1
    %p231 = por %p229, %p230
    %p233 = scmp.ne.s32.totalorder %s218, %s232
    %p234 = scmp.eq.s32.totalorder %s19, 0
    %p235 = por %p233, %p234
    %s236 = ssub.s32 %s20, %s32
    %p237 = scmp.eq.s32.totalorder %s236, 0
    %s239 = sadd.s32 %s238, 1
    %s240 = scalar_select %p237, %s238, %s239
    %p243 = pneg %p237
    %p244 = scmp.eq.s32.totalorder %s13, 1
    %p245 = por %p243, %p244
    %p246 = scmp.ne.s32.totalorder %s238, %s241
    %p247 = scmp.eq.s32.totalorder %s13, 0
    %p248 = por %p246, %p247
    %p249 = scmp.ne.s32.totalorder %s238, %s241
    %p250 = scmp.eq.s32.totalorder %s18, 1
    %p251 = por %p249, %p250
    %p252 = scmp.ne.s32.totalorder %s241, %s242
    %p253 = scmp.eq.s32.totalorder %s18, 0
    %p254 = por %p252, %p253
    %p255 = scmp.ne.s32.totalorder %s241, %s242
    %p256 = scmp.eq.s32.totalorder %s19, 1
    %p257 = por %p255, %p256
    %p259 = scmp.ne.s32.totalorder %s242, %s258
    %p260 = scmp.eq.s32.totalorder %s19, 0
    %p261 = por %p259, %p260
    %p262 = scmp.le.s32.totalorder 1, %s13
    %p263 = scmp.lt.s32.totalorder %s13, 3
    %p264 = pnand %p262, %p263
    %p265 = pneg %p264
    // Predicated region
    $region9: #{_feed_forward_impl.1} parent=5 // pred_check
      _
    $region10: #{_feed_forward_impl.1} parent=5 // pred_check_branch
      %267 = sbr.rel (%p264) target = $region12
    $region11: #{_feed_forward_impl.1} parent=5 // pred_region
      %s268 = ssub.s32 %s13, 1
      // Predicated region
      $region13: #{_feed_forward_impl.1} parent=11 // pred_check
        %p269 = pneg %p51
      $region14: #{_feed_forward_impl.1} parent=11 // pred_check_branch
        %271 = sbr.rel (%p269) target = $region16
      $region15: #{_feed_forward_impl.1} parent=11 // pred_region
        %s272 = smul.u32 2, %s22
        %p273 = scmp.lt.s32.totalorder %s272, 1
        %s274 = scalar_select %p273, %s272, 1
        %s275 = smul.addr %s274, 4
        %s276 = scalar_lea.vmem %s0, %s275
        %s277 = smul.u32 2, %s22
      $region16: #{_feed_forward_impl.1} parent=11 // pred_fallthru
        _
      // Predicated region
      $region17: #{_feed_forward_impl.1} parent=11 // pred_check
        %p278 = pneg %p228
      $region18: #{_feed_forward_impl.1} parent=11 // pred_check_branch
        %280 = sbr.rel (%p278) target = $region20
      $region19: #{_feed_forward_impl.1} parent=11 // pred_region
        _
      $region20: #{_feed_forward_impl.1} parent=11 // pred_fallthru
        _
    $region12: #{_feed_forward_impl.1} parent=5 // pred_fallthru
      _
    %p281 = scmp.lt.s32.totalorder %s13, 2
    // Predicated region
    $region21: #{_feed_forward_impl.1} parent=5 // pred_check
      %p282 = pneg %p281
    $region22: #{_feed_forward_impl.1} parent=5 // pred_check_branch
      %284 = sbr.rel (%p282) target = $region24
    $region23: #{_feed_forward_impl.1} parent=5 // pred_region
      // Predicated region
      $region25: #{_feed_forward_impl.1} parent=23 // pred_check
        %p285 = pneg %p75
      $region26: #{_feed_forward_impl.1} parent=23 // pred_check_branch
        %287 = sbr.rel (%p285) target = $region28
      $region27: #{_feed_forward_impl.1} parent=23 // pred_region
        %p288 = scmp.lt.s32.totalorder %s21, 0
        %s289 = scalar_select %p288, %s21, 0
        %p290 = scmp.lt.s32.totalorder %s289, 0
        %s291 = scalar_select %p290, %s289, 0
        %s292 = smul.addr %s291, 4
        %s293 = scalar_lea.vmem %s1, %s292
        %p294 = scmp.lt.s32.totalorder %s21, 0
        %s295 = scalar_select %p294, %s21, 0
      $region28: #{_feed_forward_impl.1} parent=23 // pred_fallthru
        _
      // Predicated region
      $region29: #{_feed_forward_impl.1} parent=23 // pred_check
        %p296 = pneg %p105
      $region30: #{_feed_forward_impl.1} parent=23 // pred_check_branch
        %298 = sbr.rel (%p296) target = $region32
      $region31: #{_feed_forward_impl.1} parent=23 // pred_region
        %p299 = scmp.lt.s32.totalorder %s21, 0
        %s300 = scalar_select %p299, %s21, 0
        %p301 = scmp.lt.s32.totalorder %s300, 0
        %s302 = scalar_select %p301, %s300, 0
        %s303 = scalar_lea.vmem %s2, %s302
        %p304 = scmp.lt.s32.totalorder %s21, 0
        %s305 = scalar_select %p304, %s21, 0
      $region32: #{_feed_forward_impl.1} parent=23 // pred_fallthru
        _
      // Predicated region
      $region33: #{_feed_forward_impl.1} parent=23 // pred_check
        %p306 = pneg %p137
      $region34: #{_feed_forward_impl.1} parent=23 // pred_check_branch
        %308 = sbr.rel (%p306) target = $region36
      $region35: #{_feed_forward_impl.1} parent=23 // pred_region
        %s309 = ssub.s32 %s21, 1
        %p310 = scmp.gt.s32.totalorder %s309, 0
        %s311 = scalar_select %p310, %s309, 0
        %p312 = scmp.lt.s32.totalorder %s311, 0
        %s313 = scalar_select %p312, %s311, 0
        %s314 = scalar_lea.vmem %s3, %s313
        %s315 = ssub.s32 %s21, 1
        %p316 = scmp.gt.s32.totalorder %s315, 0
        %s317 = scalar_select %p316, %s315, 0
      $region36: #{_feed_forward_impl.1} parent=23 // pred_fallthru
        _
      // Predicated region
      $region37: #{_feed_forward_impl.1} parent=23 // pred_check
        %p318 = pneg %p169
      $region38: #{_feed_forward_impl.1} parent=23 // pred_check_branch
        %320 = sbr.rel (%p318) target = $region40
      $region39: #{_feed_forward_impl.1} parent=23 // pred_region
        %s321 = ssub.s32 %s21, 1
        %p322 = scmp.gt.s32.totalorder %s321, 0
        %s323 = scalar_select %p322, %s321, 0
        %p324 = scmp.lt.s32.totalorder %s323, 0
        %s325 = scalar_select %p324, %s323, 0
        %s326 = scalar_lea.vmem %s4, %s325
        %s327 = ssub.s32 %s21, 1
        %p328 = scmp.gt.s32.totalorder %s327, 0
        %s329 = scalar_select %p328, %s327, 0
      $region40: #{_feed_forward_impl.1} parent=23 // pred_fallthru
        _
      // Predicated region
      $region41: #{_feed_forward_impl.1} parent=23 // pred_check
        %p330 = pneg %p201
      $region42: #{_feed_forward_impl.1} parent=23 // pred_check_branch
        %332 = sbr.rel (%p330) target = $region44
      $region43: #{_feed_forward_impl.1} parent=23 // pred_region
        %s333 = ssub.s32 %s21, 1
        %p334 = scmp.gt.s32.totalorder %s333, 0
        %s335 = scalar_select %p334, %s333, 0
        %s336 = smul.u32 16, %s335
        %p337 = scmp.lt.s32.totalorder %s336, 15
        %s338 = scalar_select %p337, %s336, 15
        %s339 = smul.addr %s338, 4
        %s340 = scalar_lea.vmem %s5, %s339
        %s341 = ssub.s32 %s21, 1
        %p342 = scmp.gt.s32.totalorder %s341, 0
        %s343 = scalar_select %p342, %s341, 0
        %s344 = smul.u32 16, %s343
      $region44: #{_feed_forward_impl.1} parent=23 // pred_fallthru
        _
    $region24: #{_feed_forward_impl.1} parent=5 // pred_fallthru
      _
    %p345 = scmp.le.s32.totalorder 1, %s13
    %p346 = scmp.lt.s32.totalorder %s13, 3
    %p347 = pnand %p345, %p346
    %p348 = pneg %p347
    // Predicated region
    $region45: #{_feed_forward_impl.1} parent=5 // pred_check
      _
    $region46: #{_feed_forward_impl.1} parent=5 // pred_check_branch
      %350 = sbr.rel (%p347) target = $region48
    $region47: #{_feed_forward_impl.1} parent=5 // pred_region
      %s351 = ssub.s32 %s13, 1
      %s352 = smul.u32 2, %s22
      %p353 = scmp.lt.s32.totalorder %s352, 1
      %s354 = scalar_select %p353, %s352, 1
      %s355 = smul.addr %s354, 4
      %s356 = scalar_lea.vmem %s0, %s355
      %p357 = pneg %p51
      %p358 = pneg %p48
      %p359 = scmp.lt.s32.totalorder %s23, 0
      %s360 = scalar_select %p359, %s23, 0
      %p361 = scmp.lt.s32.totalorder %s360, 0
      %s362 = scalar_select %p361, %s360, 0
      %s363 = smul.addr %s362, 4
      %s364 = scalar_lea.vmem %s1, %s363
      %p365 = pneg %p81
      %p366 = pneg %p78
      %p367 = scmp.lt.s32.totalorder %s23, 0
      %s368 = scalar_select %p367, %s23, 0
      %p369 = scmp.lt.s32.totalorder %s368, 0
      %s370 = scalar_select %p369, %s368, 0
      %s371 = scalar_lea.vmem %s2, %s370
      %p372 = pneg %p111
      %p373 = pneg %p108
      %s374 = ssub.s32 %s23, 1
      %p375 = scmp.gt.s32.totalorder %s374, 0
      %s376 = scalar_select %p375, %s374, 0
      %p377 = scmp.lt.s32.totalorder %s376, 0
      %s378 = scalar_select %p377, %s376, 0
      %s379 = scalar_lea.vmem %s3, %s378
      %p380 = pneg %p143
      %p381 = pneg %p140
      %s382 = ssub.s32 %s23, 1
      %p383 = scmp.gt.s32.totalorder %s382, 0
      %s384 = scalar_select %p383, %s382, 0
      %p385 = scmp.lt.s32.totalorder %s384, 0
      %s386 = scalar_select %p385, %s384, 0
      %s387 = scalar_lea.vmem %s4, %s386
      %p388 = pneg %p175
      %p389 = pneg %p172
      %s390 = ssub.s32 %s23, 1
      %p391 = scmp.gt.s32.totalorder %s390, 0
      %s392 = scalar_select %p391, %s390, 0
      %s393 = smul.u32 16, %s392
      %p394 = scmp.lt.s32.totalorder %s393, 15
      %s395 = scalar_select %p394, %s393, 15
      %s396 = smul.addr %s395, 4
      %s397 = scalar_lea.vmem %s5, %s396
      %p398 = pneg %p207
      %p399 = pneg %p204
      %p400 = pneg %p228
      %p401 = pneg %p225
      %p402 = pneg %p254
      %p403 = pneg %p251
      %s404 = smul.u32 2, %s22
      %p405 = scmp.lt.s32.totalorder %s404, 1
      %s406 = scalar_select %p405, %s404, 1
      %s407 = smul.addr %s406, 8
      %s408 = scalar_lea.vmem %s7, %s407
      %s409 = smul.u32 2, %s22
      %p410 = scmp.lt.s32.totalorder %s409, 1
      %s411 = scalar_select %p410, %s409, 1
      %s412 = smul.addr %s411, 4
      %s413 = scalar_lea.vmem %s0, %s412
      %s414 = smul.u32 2, %s22
      %p415 = scmp.lt.s32.totalorder %s23, 0
      %s416 = scalar_select %p415, %s23, 0
      %p417 = scmp.lt.s32.totalorder %s416, 0
      %s418 = scalar_select %p417, %s416, 0
      %s419 = smul.addr %s418, 4
      %s420 = scalar_lea.vmem %s1, %s419
      %p421 = scmp.lt.s32.totalorder %s23, 0
      %s422 = scalar_select %p421, %s23, 0
      %p423 = scmp.lt.s32.totalorder %s23, 0
      %s424 = scalar_select %p423, %s23, 0
      %p425 = scmp.lt.s32.totalorder %s424, 0
      %s426 = scalar_select %p425, %s424, 0
      %s427 = scalar_lea.vmem %s2, %s426
      %p428 = scmp.lt.s32.totalorder %s23, 0
      %s429 = scalar_select %p428, %s23, 0
      %s430 = ssub.s32 %s23, 1
      %p431 = scmp.gt.s32.totalorder %s430, 0
      %s432 = scalar_select %p431, %s430, 0
      %p433 = scmp.lt.s32.totalorder %s432, 0
      %s434 = scalar_select %p433, %s432, 0
      %s435 = scalar_lea.vmem %s3, %s434
      %s436 = ssub.s32 %s23, 1
      %p437 = scmp.gt.s32.totalorder %s436, 0
      %s438 = scalar_select %p437, %s436, 0
      %s439 = ssub.s32 %s23, 1
      %p440 = scmp.gt.s32.totalorder %s439, 0
      %s441 = scalar_select %p440, %s439, 0
      %p442 = scmp.lt.s32.totalorder %s441, 0
      %s443 = scalar_select %p442, %s441, 0
      %s444 = scalar_lea.vmem %s4, %s443
      %s445 = ssub.s32 %s23, 1
      %p446 = scmp.gt.s32.totalorder %s445, 0
      %s447 = scalar_select %p446, %s445, 0
      %s448 = ssub.s32 %s23, 1
      %p449 = scmp.gt.s32.totalorder %s448, 0
      %s450 = scalar_select %p449, %s448, 0
      %s451 = smul.u32 16, %s450
      %p452 = scmp.lt.s32.totalorder %s451, 15
      %s453 = scalar_select %p452, %s451, 15
      %s454 = smul.addr %s453, 4
      %s455 = scalar_lea.vmem %s5, %s454
      %s456 = ssub.s32 %s23, 1
      %p457 = scmp.gt.s32.totalorder %s456, 0
      %s458 = scalar_select %p457, %s456, 0
      %s459 = smul.u32 16, %s458
      %s460 = smul.u32 2, %s22
      %p461 = scmp.lt.s32.totalorder %s460, 1
      %s462 = scalar_select %p461, %s460, 1
      %s463 = smul.addr %s462, 8
      %s464 = scalar_lea.vmem %s7, %s463
      %s465 = smul.u32 2, %s22
      %p466 = scmp.eq.s32.totalorder %s23, 0
      // Predicated region
      $region49: #{_feed_forward_impl.1} parent=47 // pred_check
        %p467 = pneg %p466
      $region50: #{_feed_forward_impl.1} parent=47 // pred_check_branch
        %469 = sbr.rel (%p467) target = $region52
      $region51: #{_feed_forward_impl.1} parent=47 // pred_region
        %vm470 = vcmask 7168
        %471 = vst.msk [vmem:[#allocation3] sm:$0xff] %vm470, 0.0
        %472 = vst.msk [vmem:[#allocation3 + $0x8] sm:$0xff] %vm470, 0.0
        %473 = vst.msk [vmem:[#allocation4] sm:$0xff] %vm470, 0.0
        %474 = vst.msk [vmem:[#allocation4 + $0x8] sm:$0xff] %vm470, 0.0
        %475 = vst [vmem:[#allocation5] sm:$0xff] 0.0
        %476 = vst [vmem:[#allocation5 + $0x8] sm:$0xff] 0.0
      $region52: #{_feed_forward_impl.1} parent=47 // pred_fallthru
        _
      %p477 = scmp.lt.s32.totalorder %s23, 1
      // Predicated region
      $region53: #{_feed_forward_impl.1} parent=47 // pred_check
        %p478 = pneg %p477
      $region54: #{_feed_forward_impl.1} parent=47 // pred_check_branch
        %480 = sbr.rel (%p478) target = $region56
      $region55: #{_feed_forward_impl.1} parent=47 // pred_region
        %v481 = vld [vmem:[%s413] sm:$0xf]
        %v482 = vld [vmem:[%s413 + $0x4] sm:$0xf]
        %v483 = vld [vmem:[%s420] sm:$0xf]
        %v484 = vld [vmem:[%s420 + $0x4] sm:$0xf]
        %v485 = vld [vmem:[%s420 + $0x8] sm:$0xf]
        %v486 = vld [vmem:[%s420 + $0xc] sm:$0xf]
        %v487 = vld [vmem:[%s420 + $0x10] sm:$0xf]
        %v488 = vld [vmem:[%s420 + $0x14] sm:$0xf]
        %v489 = vld [vmem:[%s420 + $0x18] sm:$0xf]
        %v490 = vld [vmem:[%s420 + $0x1c] sm:$0xf]
        %v491 = vld [vmem:[%s420 + $0x20] sm:$0xf]
        %v492 = vld [vmem:[%s420 + $0x24] sm:$0xf]
        %v493 = vld [vmem:[%s420 + $0x28] sm:$0xf]
        %v494 = vld [vmem:[%s420 + $0x2c] sm:$0xf]
        %v495 = vld [vmem:[%s420 + $0x30] sm:$0xf]
        %v496 = vld [vmem:[%s420 + $0x34] sm:$0xf]
        %v497 = vld [vmem:[%s420 + $0x38] sm:$0xf]
        %v498 = vld [vmem:[%s420 + $0x3c] sm:$0xf]
        %v499 = vld [vmem:[%s427] sm:$0x1]
        %v501 = vperm.slane %v499, 0
        %v505 = vunpack.c.l.b16 %v481
        %v506 = vunpack.c.l.b16 %v482
        %v507 = vpack.c.b16 %v506, %v505
        %v525 = vunpack.c.l.b16 %v483
        %v526 = vunpack.c.l.b16 %v484
        %v527 = vunpack.c.l.b16 %v485
        %v528 = vunpack.c.l.b16 %v486
        %v529 = vunpack.c.l.b16 %v487
        %v530 = vunpack.c.l.b16 %v488
        %v531 = vunpack.c.l.b16 %v489
        %v532 = vunpack.c.l.b16 %v490
        %v533 = vunpack.c.l.b16 %v491
        %v534 = vunpack.c.l.b16 %v492
        %v535 = vunpack.c.l.b16 %v493
        %v536 = vunpack.c.l.b16 %v494
        %v537 = vunpack.c.l.b16 %v495
        %v538 = vunpack.c.l.b16 %v496
        %v539 = vunpack.c.l.b16 %v497
        %v540 = vunpack.c.l.b16 %v498
        %v541 = vpack.c.b16 %v526, %v525
        %v542 = vpack.c.b16 %v528, %v527
        %v543 = vpack.c.b16 %v530, %v529
        %v544 = vpack.c.b16 %v532, %v531
        %v545 = vpack.c.b16 %v534, %v533
        %v546 = vpack.c.b16 %v536, %v535
        %v547 = vpack.c.b16 %v538, %v537
        %v548 = vpack.c.b16 %v540, %v539
        %557 = vmatpush.bf16.msra.mxu0 %v548
        %558 = vmatpush.bf16.msra.mxu0 %v547
        %559 = vmatpush.bf16.msra.mxu0 %v546
        %560 = vmatpush.bf16.msra.mxu0 %v545
        %561 = vmatpush.bf16.msra.mxu0 %v544
        %562 = vmatpush.bf16.msra.mxu0 %v543
        %563 = vmatpush.bf16.msra.mxu0 %v542
        %564 = vmatpush.bf16.msra.mxu0 %v541
        %565 = vmatmul.bf16.gmra.mxu0 %v507
        %v566 = vpop.f32.mrf.mxu0
        %v567 = vadd.f32 %v501, %v566
        %v568 = vpop.f32.mrf.mxu0
        %v569 = vadd.f32 %v501, %v568
        %570 = vdwg.mxu0
        %v571 = vld [vmem:[#allocation3] sm:$0xff]
        %v572 = vld [vmem:[#allocation3 + $0x8] sm:$0xff]
        %573 = vadd.xlane.f32.xlu0 %v567
        %v574 = vpop.xlane.xlu0 %573
        %575 = vadd.xlane.f32.xlu0 %v569
        %v576 = vpop.xlane.xlu0 %575
        %v577 = vadd.f32 %v571, %v574
        %v578 = vadd.f32 %v572, %v576
        %vm579 = vcmask 7168
        %580 = vst.msk [vmem:[#allocation3] sm:$0xff] %vm579, %v577
        %581 = vst.msk [vmem:[#allocation3 + $0x8] sm:$0xff] %vm579, %v578
        %v582 = vld [vmem:[#allocation4] sm:$0xff]
        %v583 = vld [vmem:[#allocation4 + $0x8] sm:$0xff]
        %v584 = vmul.f32 %v567, %v567
        %v585 = vmul.f32 %v569, %v569
        %586 = vadd.xlane.f32.xlu0 %v584
        %v587 = vpop.xlane.xlu0 %586
        %588 = vadd.xlane.f32.xlu0 %v585
        %v589 = vpop.xlane.xlu0 %588
        %v590 = vadd.f32 %v582, %v587
        %v591 = vadd.f32 %v583, %v589
        %592 = vst.msk [vmem:[#allocation4] sm:$0xff] %vm579, %v590
        %593 = vst.msk [vmem:[#allocation4 + $0x8] sm:$0xff] %vm579, %v591
        %v594 = vpack.c.bf16 %v567, %v567
        %v595 = vpack.c.bf16 %v569, %v569
        %s596 = smul.u32 %s23, 2
        %s597 = smul.addr %s596, 4
        %s598 = scalar_lea.vmem [#allocation2], %s597
        %599 = vst [vmem:[%s598] sm:$0xf] %v594
        %600 = vst [vmem:[%s598 + $0x4] sm:$0xf] %v595
      $region56: #{_feed_forward_impl.1} parent=47 // pred_fallthru
        _
      %p601 = scmp.ge.s32.totalorder %s23, 1
      // Predicated region
      $region57: #{_feed_forward_impl.1} parent=47 // pred_check
        %p602 = pneg %p601
      $region58: #{_feed_forward_impl.1} parent=47 // pred_check_branch
        %604 = sbr.rel (%p602) target = $region60
      $region59: #{_feed_forward_impl.1} parent=47 // pred_region
        %s605 = ssub.s32 %s23, 1
        %p606 = scmp.eq.s32.totalorder %s23, 1
        // Predicated region
        $region61: #{_feed_forward_impl.1} parent=59 // pred_check
          %p607 = pneg %p606
        $region62: #{_feed_forward_impl.1} parent=59 // pred_check_branch
          %609 = sbr.rel (%p607) target = $region64
        $region63: #{_feed_forward_impl.1} parent=59 // pred_region
          %v610 = vld [vmem:[#allocation3] sm:$0xff]
          %v611 = vld [vmem:[#allocation3 + $0x8] sm:$0xff]
          %v612 = vmul.f32 %v610, 0.0078125
          %v613 = vmul.f32 %v611, 0.0078125
          %v614 = vld [vmem:[#allocation4] sm:$0xff]
          %v615 = vld [vmem:[#allocation4 + $0x8] sm:$0xff]
          %v616 = vmul.f32 %v614, 0.0078125
          %v617 = vmul.f32 %v615, 0.0078125
          %v618 = vmul.f32 %v612, %v612
          %v619 = vmul.f32 %v613, %v613
          %v620 = vsub.f32 %v616, %v618
          %v621 = vsub.f32 %v617, %v619
          %v622 = vadd.f32 %v620, 1e-05
          %v623 = vadd.f32 %v621, 1e-05
          %v624 = vrsqrt.pop %v622
          %v625 = vmul.f32 %v624, %v622
          %v626 = vmul.f32 %v625, %v624
          %v627 = vmul.f32 0.5, %v626
          %v628 = vsub.f32 1.5, %v627
          %v629 = vmul.f32 %v624, %v628
          %vm630 = vweird.f32 %v622
          %vm631 = vweird.f32 %v624
          %vm632 = vmor %vm630, %vm631
          %v633 = vsel %vm632, %v624, %v629
          %v634 = vrsqrt.pop %v623
          %v635 = vmul.f32 %v634, %v623
          %v636 = vmul.f32 %v635, %v634
          %v637 = vmul.f32 0.5, %v636
          %v638 = vsub.f32 1.5, %v637
          %v639 = vmul.f32 %v634, %v638
          %vm640 = vweird.f32 %v623
          %vm641 = vweird.f32 %v634
          %vm642 = vmor %vm640, %vm641
          %v643 = vsel %vm642, %v634, %v639
          %v644 = vmul.f32 %v612, %v633
          %v645 = vmul.f32 %v613, %v643
          %vm646 = vcmask 7168
          %647 = vst.msk [vmem:[#allocation3] sm:$0xff] %vm646, %v644
          %648 = vst.msk [vmem:[#allocation3 + $0x8] sm:$0xff] %vm646, %v645
          %649 = vst.msk [vmem:[#allocation4] sm:$0xff] %vm646, %v633
          %650 = vst.msk [vmem:[#allocation4 + $0x8] sm:$0xff] %vm646, %v643
        $region64: #{_feed_forward_impl.1} parent=59 // pred_fallthru
          _
        %v651 = vld [vmem:[#allocation3] sm:$0xff]
        %v652 = vld [vmem:[#allocation3 + $0x8] sm:$0xff]
        %v653 = vld [vmem:[#allocation4] sm:$0xff]
        %v654 = vld [vmem:[#allocation4 + $0x8] sm:$0xff]
        %s655 = smul.u32 %s605, 2
        %s656 = smul.addr %s655, 4
        %s657 = scalar_lea.vmem [#allocation2], %s656
        %v658 = vld [vmem:[%s657] sm:$0xf]
        %v659 = vld [vmem:[%s657 + $0x4] sm:$0xf]
        %v660 = vunpack.c.l.bf16 %v658
        %v661 = vunpack.c.l.bf16 %v659
        %663 = vset.pattern.permute.xlu0 0
        %664 = vperm.xlu0 %663, %v653
        %v665 = vpop.permute.xlu0 %664
        %668 = vset.pattern.permute.xlu0 0
        %669 = vperm.xlu0 %668, %v654
        %v670 = vpop.permute.xlu0 %669
        %v672 = vmul.f32 %v660, %v665
        %v673 = vmul.f32 %v661, %v670
        %675 = vset.pattern.permute.xlu0 0
        %676 = vperm.xlu0 %675, %v651
        %v677 = vpop.permute.xlu0 %676
        %680 = vset.pattern.permute.xlu0 0
        %681 = vperm.xlu0 %680, %v652
        %v682 = vpop.permute.xlu0 %681
        %v684 = vsub.f32 %v672, %v677
        %v685 = vsub.f32 %v673, %v682
        %v686 = vld [vmem:[%s435] sm:$0x1]
        %v688 = vperm.slane %v686, 0
        %v690 = vmul.f32 %v684, %v688
        %v691 = vmul.f32 %v685, %v688
        %v692 = vld [vmem:[%s444] sm:$0x1]
        %v694 = vperm.slane %v692, 0
        %v696 = vadd.f32 %v690, %v694
        %v697 = vadd.f32 %v691, %v694
        %v698 = vmul.f32 %v696, 0.044715
        %v699 = vmul.f32 %v697, 0.044715
        %v700 = vmul.f32 %v698, %v696
        %v701 = vmul.f32 %v699, %v697
        %v702 = vmul.f32 %v700, %v696
        %v703 = vmul.f32 %v701, %v697
        %v704 = vadd.f32 %v696, %v702
        %v705 = vadd.f32 %v697, %v703
        %v706 = vmul.f32 %v704, 0.7978846
        %v707 = vmul.f32 %v705, 0.7978846
        %v708 = vmul.f32 %v696, 0.5
        %v709 = vmul.f32 %v697, 0.5
        %v710 = vtanh.pop %v706
        %v711 = vtanh.pop %v707
        %v712 = vadd.f32 %v710, 1.0
        %v713 = vadd.f32 %v711, 1.0
        %v714 = vmul.f32 %v708, %v712
        %v715 = vmul.f32 %v709, %v713
        %v716 = vld [vmem:[#allocation5] sm:$0xff]
        %v717 = vld [vmem:[#allocation5 + $0x8] sm:$0xff]
        %v718 = vpack.c.bf16 %v715, %v714
        %v719 = vld [vmem:[%s455] sm:$0xf]
        %v720 = vld [vmem:[%s455 + $0x4] sm:$0xf]
        %v721 = vld [vmem:[%s455 + $0x8] sm:$0xf]
        %v722 = vld [vmem:[%s455 + $0xc] sm:$0xf]
        %v723 = vld [vmem:[%s455 + $0x10] sm:$0xf]
        %v724 = vld [vmem:[%s455 + $0x14] sm:$0xf]
        %v725 = vld [vmem:[%s455 + $0x18] sm:$0xf]
        %v726 = vld [vmem:[%s455 + $0x1c] sm:$0xf]
        %v727 = vld [vmem:[%s455 + $0x20] sm:$0xf]
        %v728 = vld [vmem:[%s455 + $0x24] sm:$0xf]
        %v729 = vld [vmem:[%s455 + $0x28] sm:$0xf]
        %v730 = vld [vmem:[%s455 + $0x2c] sm:$0xf]
        %v731 = vld [vmem:[%s455 + $0x30] sm:$0xf]
        %v732 = vld [vmem:[%s455 + $0x34] sm:$0xf]
        %v733 = vld [vmem:[%s455 + $0x38] sm:$0xf]
        %v734 = vld [vmem:[%s455 + $0x3c] sm:$0xf]
        %v751 = vunpack.c.l.b16 %v719
        %v752 = vunpack.c.l.b16 %v720
        %v753 = vunpack.c.l.b16 %v721
        %v754 = vunpack.c.l.b16 %v722
        %v755 = vunpack.c.l.b16 %v723
        %v756 = vunpack.c.l.b16 %v724
        %v757 = vunpack.c.l.b16 %v725
        %v758 = vunpack.c.l.b16 %v726
        %v759 = vunpack.c.l.b16 %v727
        %v760 = vunpack.c.l.b16 %v728
        %v761 = vunpack.c.l.b16 %v729
        %v762 = vunpack.c.l.b16 %v730
        %v763 = vunpack.c.l.b16 %v731
        %v764 = vunpack.c.l.b16 %v732
        %v765 = vunpack.c.l.b16 %v733
        %v766 = vunpack.c.l.b16 %v734
        %v767 = vpack.c.b16 %v752, %v751
        %v768 = vpack.c.b16 %v754, %v753
        %v769 = vpack.c.b16 %v756, %v755
        %v770 = vpack.c.b16 %v758, %v757
        %v771 = vpack.c.b16 %v760, %v759
        %v772 = vpack.c.b16 %v762, %v761
        %v773 = vpack.c.b16 %v764, %v763
        %v774 = vpack.c.b16 %v766, %v765
        %783 = vmatpush.bf16.msra.mxu0 %v774
        %784 = vmatpush.bf16.msra.mxu0 %v773
        %785 = vmatpush.bf16.msra.mxu0 %v772
        %786 = vmatpush.bf16.msra.mxu0 %v771
        %787 = vmatpush.bf16.msra.mxu0 %v770
        %788 = vmatpush.bf16.msra.mxu0 %v769
        %789 = vmatpush.bf16.msra.mxu0 %v768
        %790 = vmatpush.bf16.msra.mxu0 %v767
        %791 = vmatmul.bf16.gmra.mxu0 %v718
        %v792 = vpop.f32.mrf.mxu0
        %v793 = vadd.f32 0.0, %v792
        %v794 = vpop.f32.mrf.mxu0
        %v795 = vadd.f32 0.0, %v794
        %796 = vdwg.mxu0
        %v797 = vadd.f32 %v716, %v793
        %v798 = vadd.f32 %v717, %v795
        %799 = vst [vmem:[#allocation5] sm:$0xff] %v797
        %800 = vst [vmem:[#allocation5 + $0x8] sm:$0xff] %v798
        // Predicated region
        $region65: #{_feed_forward_impl.1} parent=59 // pred_check
          %p801 = pneg %p606
        $region66: #{_feed_forward_impl.1} parent=59 // pred_check_branch
          %803 = sbr.rel (%p801) target = $region68
        $region67: #{_feed_forward_impl.1} parent=59 // pred_region
          %v804 = vld [vmem:[#allocation5] sm:$0xff]
          %v805 = vld [vmem:[#allocation5 + $0x8] sm:$0xff]
          %v806 = vld [vmem:[%s6] sm:$0x1]
          %v808 = vperm.slane %v806, 0
          %v810 = vadd.f32 %v804, %v808
          %v811 = vadd.f32 %v805, %v808
          %812 = vst [vmem:[%s464] sm:$0xff] %v810
          %813 = vst [vmem:[%s464 + $0x8] sm:$0xff] %v811
        $region68: #{_feed_forward_impl.1} parent=59 // pred_fallthru
          _
      $region60: #{_feed_forward_impl.1} parent=47 // pred_fallthru
        _
      %s814 = smul.u32 2, %s22
      %p815 = scmp.lt.s32.totalorder %s814, 1
      %s816 = scalar_select %p815, %s814, 1
      %s817 = smul.addr %s816, 8
      %s818 = scalar_lea.vmem %s7, %s817
      // Predicated region
      $region69: #{_feed_forward_impl.1} parent=47 // pred_check
        %p819 = pneg %p251
      $region70: #{_feed_forward_impl.1} parent=47 // pred_check_branch
        %821 = sbr.rel (%p819) target = $region72
      $region71: #{_feed_forward_impl.1} parent=47 // pred_region
        %s822 = smul.u32 2, %s22
      $region72: #{_feed_forward_impl.1} parent=47 // pred_fallthru
        _
      // Predicated region
      $region73: #{_feed_forward_impl.1} parent=47 // pred_check
        %p823 = pneg %p251
      $region74: #{_feed_forward_impl.1} parent=47 // pred_check_branch
        %825 = sbr.rel (%p823) target = $region76
      $region75: #{_feed_forward_impl.1} parent=47 // pred_region
        %s826 = smul.u32 2, %s22
        %p827 = scmp.lt.s32.totalorder %s826, 1
        %s828 = scalar_select %p827, %s826, 1
        %s829 = smul.addr %s828, 8
        %s830 = scalar_lea.vmem %s7, %s829
      $region76: #{_feed_forward_impl.1} parent=47 // pred_fallthru
        _
    $region48: #{_feed_forward_impl.1} parent=5 // pred_fallthru
      _
    %p831 = scmp.le.s32.totalorder 2, %s13
    // Predicated region
    $region77: #{_feed_forward_impl.1} parent=5 // pred_check
      %p832 = pneg %p831
    $region78: #{_feed_forward_impl.1} parent=5 // pred_check_branch
      %834 = sbr.rel (%p832) target = $region80
    $region79: #{_feed_forward_impl.1} parent=5 // pred_region
      %s835 = ssub.s32 %s13, 2
    $region80: #{_feed_forward_impl.1} parent=5 // pred_fallthru
      _
  $region6: #{_feed_forward_impl.1} parent=0 // loop_footer
    %s17 = sadd.s32 1, %s13
  $region7: #{_feed_forward_impl.1} parent=0 // loop_footer_branch
    %12 = sbr.rel target = $region3
  $region8: #{_feed_forward_impl.1} parent=0 // loop_exit
    _

</llo_original>
